<compile_context>
chip_gen: v7x
topology: tpu7x:2x2x1
jax: 0.10.0
libtpu: 0.0.40
codegen_flags: <defaults>
</compile_context>

<pallas_src>
import numpy as np
import jax
import jax.numpy as jnp
from jax.experimental import pallas as pl
from jax.experimental.pallas import tpu as pltpu

# ---------------------------------------------------------------------------
# Module-level augmentation hyper-parameters (undefined constants in the
# reference file; chosen deterministically here).
# ---------------------------------------------------------------------------
AUG_PROB = 0.5
# Geometric augmentations disabled in this configuration:
# TODO(synk): the geometric warp branch (reflect pad with runtime-random margins,
# upfirdn2d up/downsample with the sym6 FIR, affine grid_sample) produces
# data-dependent intermediate shapes and has no clean JAX/Pallas equivalent.
AUG_XFLIP = 0.0
AUG_ROT90 = 0.0
AUG_XINT = 0.0
AUG_SCALE = 0.0
AUG_ROT = 0.0
AUG_ANISO = 0.0
AUG_XFRAC = 0.0
# Color augmentations (the hot path implemented in the Pallas kernel below).
AUG_BRIGHTNESS = 1.0
AUG_CONTRAST = 1.0
AUG_LUMAFLIP = 1.0
AUG_HUE = 1.0
AUG_SAT = 1.0

sym6wavelet = [0.015404109327027373, 0.0034907120842174702, -0.11799011114819057,
               -0.048311742585633, 0.4910559419267466, 0.787641141030194,
               0.3379294217276218, -0.07263752278646252, -0.021060292512300564,
               0.04472490177066578, 0.0017677118642428036, -0.007800708325034148]


# ---------------------------------------------------------------------------
# Plain-JAX glue: per-batch color matrix construction (mirrors the reference).
# ---------------------------------------------------------------------------
def batch_id(n, batch):
    return jnp.tile(jnp.eye(n, dtype=jnp.float32)[None], (batch, 1, 1))


def prob_mask(key, dist, size, mult, fn, thresh, fill=jnp.zeros_like, num_vars=1):
    k_val, k_mask = jax.random.split(key)
    shape = tuple(size) + ((num_vars,) if num_vars > 1 else ())
    i = dist(k_val, shape, dtype=jnp.float32)
    i = mult * i
    i = fn(i)
    mask_shape = tuple(size) + ((1,) if num_vars > 1 else ())
    u = jax.random.uniform(k_mask, mask_shape, dtype=jnp.float32)
    return jnp.where(u < thresh, i, fill(i))


def translate3D(t_x, t_y, t_z):
    ret = batch_id(4, t_x.shape[0])
    ret = ret.at[:, 0, 3].set(t_x)
    ret = ret.at[:, 1, 3].set(t_y)
    ret = ret.at[:, 2, 3].set(t_z)
    return ret


def scale3D(s_x, s_y, s_z):
    ret = batch_id(4, s_x.shape[0])
    ret = ret.at[:, 0, 0].set(s_x)
    ret = ret.at[:, 1, 1].set(s_y)
    ret = ret.at[:, 2, 2].set(s_z)
    return ret


def lumaFlip3D(v, i):
    # i: [B, 1, 1]
    i_4 = batch_id(4, i.shape[0])
    return i_4 - 2.0 * jnp.outer(v, v) * i


def rotate3D(v, theta):
    vx, vy, vz, _ = v
    s = jnp.sin(theta)
    c = jnp.cos(theta)
    cc = 1.0 - c
    ret = batch_id(4, theta.shape[0])
    ret = ret.at[:, 0, 0].set(vx * vx * cc + c)
    ret = ret.at[:, 0, 1].set(vx * vy * cc - vz * s)
    ret = ret.at[:, 0, 2].set(vx * vz * cc + vy * s)
    # NOTE: `vy * s` (not `vz * s`) is replicated verbatim from the PyTorch
    # reference to preserve its forward-pass semantics exactly.
    ret = ret.at[:, 1, 0].set(vy * vx * cc + vy * s)
    ret = ret.at[:, 1, 1].set(vy * vy * cc + c)
    ret = ret.at[:, 1, 2].set(vy * vz * cc - vx * s)
    ret = ret.at[:, 2, 0].set(vz * vx * cc - vy * s)
    ret = ret.at[:, 2, 1].set(vz * vy * cc + vx * s)
    ret = ret.at[:, 2, 2].set(vz * vz * cc + c)
    return ret


def saturation3D(v, i):
    i_4 = batch_id(4, i.shape[0])
    vv = jnp.outer(v, v)
    return vv + (i_4 - vv) * i.reshape(-1, 1, 1)


# ---------------------------------------------------------------------------
# Pallas kernel: per-image 3x3 color-matrix affine applied over all pixels.
# ---------------------------------------------------------------------------
def _color_matrix_kernel(ct_ref, x_ref, o_ref):
    """out[c, :, :] = m[c,0]*R + m[c,1]*G + m[c,2]*B + t[c].

    Arguments:
      ct_ref: SMEM (B, 12) scalar-prefetch array; row b holds
              [m00, m01, m02, t0, m10, m11, m12, t1, m20, m21, m22, t2].
      x_ref:  VMEM block (1, 3, ROWS, 128)  — lane/sublane-dense pixel slabs.
      o_ref:  VMEM block (1, 3, ROWS, 128).
    """
    b = pl.program_id(0)
    # Full (ROWS, 128) slabs per input channel -> dense vregs on the VPU.
    r = x_ref[0, 0]
    g = x_ref[0, 1]
    bl = x_ref[0, 2]
    # K = 3 contraction is far below MXU tile size -> keep it on the VPU as
    # broadcast FMAs (the kernel is HBM-bound; the MXU would be <3% utilized).
    for c in range(3):
        out_c = (ct_ref[b, 4 * c + 0] * r
                 + ct_ref[b, 4 * c + 1] * g
                 + ct_ref[b, 4 * c + 2] * bl
                 + ct_ref[b, 4 * c + 3])
        o_ref[0, c] = out_c.astype(o_ref.dtype)


def apply_color_matrix(C, x, *, rows_max=2048):
    """x: [B, 3, H, W]; C: [B, 4, 4].  Returns C[:, :3, :3] @ x_flat + C[:, :3, 3:].

    Tiling: pixels are padded up to a multiple of 128 lanes and viewed as
    (B, 3, rows, 128).  Each grid step processes (1, 3, rows_blk, 128):
    rows_max=2048 -> 3 MiB of payload per step, ~12 MiB double-buffered
    working set (in + out), which fits the default scoped-VMEM limit on
    v5e/v6e and stays well under v7x's 64 MiB physical VMEM while keeping
    double-buffering alive.  Grid is (B, row_blocks), both axes parallel, so
    v7x's two TensorCores both get work whenever B*row_blocks >= 2.
    """
    B, ch, h, w = x.shape
    assert ch == 3, "color transform requires 3 channels"
    hw = h * w
    LANE = 128
    rows_total = -(-hw // LANE)          # ceil(hw / 128)

    if rows_total <= rows_max:
        rows_blk = rows_total            # single row-block (full-dim block allowed)
        n_row_blks = 1
    else:
        n_row_blks = -(-rows_total // rows_max)
        rows_blk = -(-rows_total // n_row_blks)
        rows_blk = ((rows_blk + 7) // 8) * 8    # sublane-dense block
        n_row_blks = -(-rows_total // rows_blk)
    rows_padded = rows_blk * n_row_blks
    hw_padded = rows_padded * LANE

    # Pack the 3x3 matrix and offset into 12 scalars per image -> SMEM via
    # scalar prefetch (no per-step tiny VMEM DMAs for the matrices).
    m = jnp.asarray(C[:, :3, :3], jnp.float32)            # (B, 3, 3)
    t = jnp.asarray(C[:, :3, 3:4], jnp.float32)           # (B, 3, 1)
    ct = jnp.concatenate([m, t], axis=-1).reshape(B, 12)  # (B, 12)

    x_flat = x.reshape(B, 3, hw)
    if hw_padded != hw:
        # Lane-dense output (multiple of 128) is the biggest store-path lever;
        # pad the pixel axis and slice the tail off afterwards.
        x_flat = jnp.pad(x_flat, ((0, 0), (0, 0), (0, hw_padded - hw)))
    x_slab = x_flat.reshape(B, 3, rows_padded, LANE)

    cost = pl.CostEstimate(
        flops=6 * 3 * B * hw,                                   # 3 FMAs / out-chan / pixel
        transcendentals=0,
        bytes_accessed=2 * B * 3 * hw_padded * x.dtype.itemsize)

    out = pl.pallas_call(
        _color_matrix_kernel,
        out_shape=jax.ShapeDtypeStruct((B, 3, rows_padded, LANE), x.dtype),
        grid_spec=pltpu.PrefetchScalarGridSpec(
            num_scalar_prefetch=1,
            grid=(B, n_row_blks),
            in_specs=[
                pl.BlockSpec((1, 3, rows_blk, LANE),
                             lambda b, j, ct_ref: (b, 0, j, 0)),
            ],
            out_specs=pl.BlockSpec((1, 3, rows_blk, LANE),
                                   lambda b, j, ct_ref: (b, 0, j, 0)),
        ),
        compiler_params=pltpu.CompilerParams(
            dimension_semantics=("parallel", "parallel")),
        cost_estimate=cost,
        # x_slab (flat input index 1, after the scalar-prefetch operand) may be
        # reused for the output when the surrounding jit proves it dead.
        input_output_aliases={1: 0},
    )(ct, x_slab)

    out = out.reshape(B, 3, hw_padded)[:, :, :hw]
    return out.reshape(B, 3, h, w)


# ---------------------------------------------------------------------------
# AugmentLayer
# ---------------------------------------------------------------------------
class AugmentLayer:
    def __init__(self):
        # upfirdn2d.setup_filter(sym6wavelet): 1-D separable filter, normalized.
        f = jnp.asarray(sym6wavelet, jnp.float32)
        self.fir_k = f / jnp.sum(f)
        self.aug_prob = jnp.asarray([AUG_PROB], jnp.float32)
        self.updates = 0
        self.r_t = 0
        self.d_outs = jnp.zeros((1,), jnp.float32)
        self.num_outs = 0

    def __call__(self, x, key):
        return self.forward(x, key)

    def forward(self, x, key):
        batch_size, ch, h, w = x.shape
        keys = jax.random.split(key, 8)
        aug_prob = float(self.aug_prob[0])

        # ---- geometric branch ----
        # All geometric AUG_* are 0 in this configuration, so G_inv stays I_3 and
        # the warp branch is skipped (matches the reference `if G_inv is not I_3`).
        # TODO(synk): geometric warp (random reflect pad + upfirdn2d + grid_sample)
        # not ported: intermediate shapes depend on runtime random values.

        # ---- color branch ----
        C = batch_id(4, batch_size)
        color_applied = False
        v = jnp.asarray([1.0, 1.0, 1.0, 0.0], jnp.float32) / np.sqrt(3.0)

        if AUG_BRIGHTNESS > 0:
            b = prob_mask(keys[0], jax.random.normal, [batch_size], 0.2,
                          lambda z: z, aug_prob * AUG_BRIGHTNESS)
            C = translate3D(b, b, b) @ C
            color_applied = True
        if AUG_CONTRAST > 0:
            c = prob_mask(keys[1], jax.random.normal, [batch_size], 0.5,
                          jnp.exp2, aug_prob * AUG_CONTRAST, fill=jnp.ones_like)
            C = scale3D(c, c, c) @ C
            color_applied = True
        if AUG_LUMAFLIP > 0:
            i = prob_mask(keys[2], jax.random.uniform, [batch_size], 2,
                          jnp.floor, aug_prob * AUG_LUMAFLIP)
            i = i[:, None, None]
            C = lumaFlip3D(v, i) @ C
            color_applied = True
        if AUG_HUE > 0:
            theta = prob_mask(keys[3], jax.random.uniform, [batch_size], 2,
                              lambda z: z - 1.0, aug_prob * AUG_HUE)
            theta = theta * np.pi
            C = rotate3D(v, theta) @ C
            color_applied = True
        if AUG_SAT > 0:
            s = prob_mask(keys[4], jax.random.normal, [batch_size], 1.0,
                          jnp.exp2, aug_prob * AUG_SAT, fill=jnp.ones_like)
            C = saturation3D(v, s) @ C
            color_applied = True

        if color_applied:  # mirrors `if C is not I_4`
            x = apply_color_matrix(C, x)
        return x


if __name__ == "__main__":
    key = jax.random.PRNGKey(0)
    kx, kaug, kc, kx2, kx3 = jax.random.split(key, 5)

    # NCHW input, 3 channels (required by the color-matrix path).
    x = jax.random.normal(kx, (2, 3, 16, 16), dtype=jnp.float32)

    layer = AugmentLayer()
    y = layer.forward(x, kaug)
    y = jax.block_until_ready(y)
    assert y.shape == x.shape and y.dtype == x.dtype

    def _ref(Cm, xi):
        b = xi.shape[0]
        return (jnp.einsum('bij,bjp->bip', Cm[:, :3, :3], xi.reshape(b, 3, -1))
                + Cm[:, :3, 3:]).reshape(xi.shape)

    # 1) Exact 128-multiple pixel count (no padding path).
    C_test = jax.random.normal(kc, (2, 4, 4), dtype=jnp.float32)
    got = jax.block_until_ready(apply_color_matrix(C_test, x))
    np.testing.assert_allclose(np.asarray(got), np.asarray(_ref(C_test, x)),
                               rtol=1e-5, atol=1e-5)

    # 2) Non-128-multiple pixel count (exercises lane padding + tail slicing).
    x2 = jax.random.normal(kx2, (2, 3, 17, 19), dtype=jnp.float32)
    got2 = jax.block_until_ready(apply_color_matrix(C_test, x2))
    np.testing.assert_allclose(np.asarray(got2), np.asarray(_ref(C_test, x2)),
                               rtol=1e-5, atol=1e-5)

    # 3) Multi row-block path (small rows_max forces grid tiling + row padding).
    x3 = jax.random.normal(kx3, (2, 3, 48, 40), dtype=jnp.float32)
    got3 = jax.block_until_ready(apply_color_matrix(C_test, x3, rows_max=8))
    np.testing.assert_allclose(np.asarray(got3), np.asarray(_ref(C_test, x3)),
                               rtol=1e-5, atol=1e-5)

    print("KERNEL_OK")
</pallas_src>

<mosaic_0001>
module attributes {stable_mosaic.version = 11 : i64} {
  func.func @_color_matrix_kernel(%arg0: i32, %arg1: i32, %arg2: memref<2x12xf32, #tpu.memory_space<smem>>, %arg3: memref<1x3x2x128xf32, #tpu.memory_space<vmem>>, %arg4: memref<1x3x2x128xf32, #tpu.memory_space<vmem>>) attributes {dimension_semantics = [#tpu.dimension_semantics<parallel>, #tpu.dimension_semantics<parallel>], iteration_bounds = array<i64: 2, 1>, scalar_prefetch = 1 : i64, scratch_operands = 0 : i64, tpu.core_type = #tpu.core_type<tc>, window_params = [{transform_indices = @transform_0, window_bounds = array<i64: 1, 3, 2, 128>}, {transform_indices = @transform_1, window_bounds = array<i64: 1, 3, 2, 128>}]} {
    %c0 = arith.constant 0 : index
    %c0_0 = arith.constant 0 : index
    %c0_1 = arith.constant 0 : index
    %c0_2 = arith.constant 0 : index
    %0 = vector.load %arg3[%c0, %c0_0, %c0_1, %c0_2] : memref<1x3x2x128xf32, #tpu.memory_space<vmem>>, vector<1x1x2x128xf32>
    %1 = vector.shape_cast %0 : vector<1x1x2x128xf32> to vector<2x128xf32>
    %c0_3 = arith.constant 0 : index
    %c1 = arith.constant 1 : index
    %c0_4 = arith.constant 0 : index
    %c0_5 = arith.constant 0 : index
    %2 = vector.load %arg3[%c0_3, %c1, %c0_4, %c0_5] : memref<1x3x2x128xf32, #tpu.memory_space<vmem>>, vector<1x1x2x128xf32>
    %3 = vector.shape_cast %2 : vector<1x1x2x128xf32> to vector<2x128xf32>
    %c0_6 = arith.constant 0 : index
    %c2 = arith.constant 2 : index
    %c0_7 = arith.constant 0 : index
    %c0_8 = arith.constant 0 : index
    %4 = vector.load %arg3[%c0_6, %c2, %c0_7, %c0_8] : memref<1x3x2x128xf32, #tpu.memory_space<vmem>>, vector<1x1x2x128xf32>
    %5 = vector.shape_cast %4 : vector<1x1x2x128xf32> to vector<2x128xf32>
    %6 = arith.index_cast %arg0 : i32 to index
    %c0_9 = arith.constant 0 : index
    %7 = memref.load %arg2[%6, %c0_9] : memref<2x12xf32, #tpu.memory_space<smem>>
    %8 = vector.broadcast %7 : f32 to vector<2x128xf32>
    %9 = arith.mulf %8, %1 : vector<2x128xf32>
    %10 = arith.index_cast %arg0 : i32 to index
    %c1_10 = arith.constant 1 : index
    %11 = memref.load %arg2[%10, %c1_10] : memref<2x12xf32, #tpu.memory_space<smem>>
    %12 = vector.broadcast %11 : f32 to vector<2x128xf32>
    %13 = arith.mulf %12, %3 : vector<2x128xf32>
    %14 = arith.addf %9, %13 : vector<2x128xf32>
    %15 = arith.index_cast %arg0 : i32 to index
    %c2_11 = arith.constant 2 : index
    %16 = memref.load %arg2[%15, %c2_11] : memref<2x12xf32, #tpu.memory_space<smem>>
    %17 = vector.broadcast %16 : f32 to vector<2x128xf32>
    %18 = arith.mulf %17, %5 : vector<2x128xf32>
    %19 = arith.addf %14, %18 : vector<2x128xf32>
    %20 = arith.index_cast %arg0 : i32 to index
    %c3 = arith.constant 3 : index
    %21 = memref.load %arg2[%20, %c3] : memref<2x12xf32, #tpu.memory_space<smem>>
    %22 = vector.broadcast %21 : f32 to vector<2x128xf32>
    %23 = arith.addf %19, %22 : vector<2x128xf32>
    %c0_12 = arith.constant 0 : index
    %c0_13 = arith.constant 0 : index
    %c0_14 = arith.constant 0 : index
    %c0_15 = arith.constant 0 : index
    %24 = vector.load %arg4[%c0_12, %c0_13, %c0_14, %c0_15] : memref<1x3x2x128xf32, #tpu.memory_space<vmem>>, vector<1x1x2x128xf32>
    %25 = vector.shape_cast %24 : vector<1x1x2x128xf32> to vector<2x128xf32>
    %26 = vector.shape_cast %23 : vector<2x128xf32> to vector<1x1x2x128xf32>
    tpu.vector_store %arg4[%c0_12, %c0_13, %c0_14, %c0_15], %26 {strides = array<i32>} : memref<1x3x2x128xf32, #tpu.memory_space<vmem>>, vector<1x1x2x128xf32>,
    %27 = arith.index_cast %arg0 : i32 to index
    %c4 = arith.constant 4 : index
    %28 = memref.load %arg2[%27, %c4] : memref<2x12xf32, #tpu.memory_space<smem>>
    %29 = vector.broadcast %28 : f32 to vector<2x128xf32>
    %30 = arith.mulf %29, %1 : vector<2x128xf32>
    %31 = arith.index_cast %arg0 : i32 to index
    %c5 = arith.constant 5 : index
    %32 = memref.load %arg2[%31, %c5] : memref<2x12xf32, #tpu.memory_space<smem>>
    %33 = vector.broadcast %32 : f32 to vector<2x128xf32>
    %34 = arith.mulf %33, %3 : vector<2x128xf32>
    %35 = arith.addf %30, %34 : vector<2x128xf32>
    %36 = arith.index_cast %arg0 : i32 to index
    %c6 = arith.constant 6 : index
    %37 = memref.load %arg2[%36, %c6] : memref<2x12xf32, #tpu.memory_space<smem>>
    %38 = vector.broadcast %37 : f32 to vector<2x128xf32>
    %39 = arith.mulf %38, %5 : vector<2x128xf32>
    %40 = arith.addf %35, %39 : vector<2x128xf32>
    %41 = arith.index_cast %arg0 : i32 to index
    %c7 = arith.constant 7 : index
    %42 = memref.load %arg2[%41, %c7] : memref<2x12xf32, #tpu.memory_space<smem>>
    %43 = vector.broadcast %42 : f32 to vector<2x128xf32>
    %44 = arith.addf %40, %43 : vector<2x128xf32>
    %c0_16 = arith.constant 0 : index
    %c1_17 = arith.constant 1 : index
    %c0_18 = arith.constant 0 : index
    %c0_19 = arith.constant 0 : index
    %45 = vector.load %arg4[%c0_16, %c1_17, %c0_18, %c0_19] : memref<1x3x2x128xf32, #tpu.memory_space<vmem>>, vector<1x1x2x128xf32>
    %46 = vector.shape_cast %45 : vector<1x1x2x128xf32> to vector<2x128xf32>
    %47 = vector.shape_cast %44 : vector<2x128xf32> to vector<1x1x2x128xf32>
    tpu.vector_store %arg4[%c0_16, %c1_17, %c0_18, %c0_19], %47 {strides = array<i32>} : memref<1x3x2x128xf32, #tpu.memory_space<vmem>>, vector<1x1x2x128xf32>,
    %48 = arith.index_cast %arg0 : i32 to index
    %c8 = arith.constant 8 : index
    %49 = memref.load %arg2[%48, %c8] : memref<2x12xf32, #tpu.memory_space<smem>>
    %50 = vector.broadcast %49 : f32 to vector<2x128xf32>
    %51 = arith.mulf %50, %1 : vector<2x128xf32>
    %52 = arith.index_cast %arg0 : i32 to index
    %c9 = arith.constant 9 : index
    %53 = memref.load %arg2[%52, %c9] : memref<2x12xf32, #tpu.memory_space<smem>>
    %54 = vector.broadcast %53 : f32 to vector<2x128xf32>
    %55 = arith.mulf %54, %3 : vector<2x128xf32>
    %56 = arith.addf %51, %55 : vector<2x128xf32>
    %57 = arith.index_cast %arg0 : i32 to index
    %c10 = arith.constant 10 : index
    %58 = memref.load %arg2[%57, %c10] : memref<2x12xf32, #tpu.memory_space<smem>>
    %59 = vector.broadcast %58 : f32 to vector<2x128xf32>
    %60 = arith.mulf %59, %5 : vector<2x128xf32>
    %61 = arith.addf %56, %60 : vector<2x128xf32>
    %62 = arith.index_cast %arg0 : i32 to index
    %c11 = arith.constant 11 : index
    %63 = memref.load %arg2[%62, %c11] : memref<2x12xf32, #tpu.memory_space<smem>>
    %64 = vector.broadcast %63 : f32 to vector<2x128xf32>
    %65 = arith.addf %61, %64 : vector<2x128xf32>
    %c0_20 = arith.constant 0 : index
    %c2_21 = arith.constant 2 : index
    %c0_22 = arith.constant 0 : index
    %c0_23 = arith.constant 0 : index
    %66 = vector.load %arg4[%c0_20, %c2_21, %c0_22, %c0_23] : memref<1x3x2x128xf32, #tpu.memory_space<vmem>>, vector<1x1x2x128xf32>
    %67 = vector.shape_cast %66 : vector<1x1x2x128xf32> to vector<2x128xf32>
    %68 = vector.shape_cast %65 : vector<2x128xf32> to vector<1x1x2x128xf32>
    tpu.vector_store %arg4[%c0_20, %c2_21, %c0_22, %c0_23], %68 {strides = array<i32>} : memref<1x3x2x128xf32, #tpu.memory_space<vmem>>, vector<1x1x2x128xf32>,
    return
  }
  func.func @transform_0(%arg0: i32, %arg1: i32, %arg2: memref<2x12xf32, #tpu.memory_space<smem>>) -> (i32, i32, i32, i32) {
    %c0_i32 = arith.constant 0 : i32
    %c0_i32_0 = arith.constant 0 : i32
    %c0_i32_1 = arith.constant 0 : i32
    return %arg0, %c0_i32, %arg1, %c0_i32_0 : i32, i32, i32, i32
  }
  func.func @transform_1(%arg0: i32, %arg1: i32, %arg2: memref<2x12xf32, #tpu.memory_space<smem>>) -> (i32, i32, i32, i32) {
    %c0_i32 = arith.constant 0 : i32
    %c0_i32_0 = arith.constant 0 : i32
    %c0_i32_1 = arith.constant 0 : i32
    return %arg0, %c0_i32, %arg1, %c0_i32_0 : i32, i32, i32, i32
  }
}

</mosaic_0001>

<llo_original>
// kernel: tpu_custom_call.1
$region0: #{tpu_custom_call.1}
  #allocation0 [shape = 'u32[]', space=smem, size = 0x4, offset = 0x4, fixed_abs, tag = 'smem constant byte address 0x4 - core index']
  #allocation1 [shape = 'u32[144,128]{1,0:T(1,128)}', space=vmem, size = 0x12000, scoped, tag = 'internal scratch']
  #allocation2 [shape = 's32[1]{0}', space=sflag, size = 0x4, scoped, tag = 'scoped memory for tpu_custom_call.1']
  #allocation3 [shape = 'u8[1024]{0}', space=smem, size = 0x400, scoped, tag = 'prefetched SMEM operand 0']
  %s0 = inlined_call_operand.vmem [shape: f32[2,12], index: 0, kind: input, shape index: {}]
  %s1 = inlined_call_operand.hbm [shape: f32[2,3,2,128], index: 1, kind: input, shape index: {}, may-alias: {1,2}]
  %s2 = inlined_call_operand.hbm [shape: f32[2,3,2,128], index: 2, kind: output, shape index: {}, may-alias: {1,2}]
  %s3 = sld [smem:[#allocation0]]
  $region41: #{tpu_custom_call.1} parent=0
    _
  %s5 = ssub.s32 1, %s3
  %s6 = scalar_select 0, %s5, %s3
  %s7 = sshll.u32 %s0, 4
  %s8 = int_to_ptr.vmem [resolvable:$true] %s7
  %10 = dma.vmem_to_smem %s8, 32, [#allocation3], [#allocation2]
  %11 = dma.done [#allocation2], 32
  %12 = sfence
  $region1: #{tpu_custom_call.1} parent=0
    #allocation4 [shape = 'u8[6144]{0}', space=vmem, size = 0x1800, scoped, tag = 'input window, operand 1']
    #allocation5 [shape = 's32[2]{0}', space=sflag, size = 0x8, scoped, tag = 'scoped memory for tpu_custom_call.1']
    #allocation6 [shape = 's32[2]{0}', space=sflag, size = 0x8, scoped, tag = 'scoped memory for tpu_custom_call.1']
    #allocation7 [shape = 'u8[6144]{0}', space=vmem, size = 0x1800, scoped, tag = 'output window, operand 0']
    %13 = vsyncpa [#allocation5], 0
    %s14 = scalar_lea.sflag [#allocation5], 1
    %15 = vsyncpa %s14, 0
    %16 = vsyncpa [#allocation6], 0
    %s17 = scalar_lea.sflag [#allocation6], 1
    %18 = vsyncpa %s17, 0
    loop: start=0, step=1, limit=4
    $region2: #{tpu_custom_call.1} parent=1 // loop_pre_header
      _
    $region3: #{tpu_custom_call.1} parent=1 // loop_header
      %s20 = sphi 0, %s24
      %p21 = scmp.ge.s32.totalorder %s20, 4
      %s27 = sphi 0, %s39
      %s28 = sphi 0, %s35
      %s29 = sphi 0, %s27
      %s30 = sphi 0, %s28
      %s31 = sphi 0, %s29
      %s32 = sphi 0, %s30
      %s44 = sphi 0, %s46
      %s47 = sphi 0, %s44
      %s48 = sphi 0, %s47
      %s64 = sphi 0, %s48
      %s72 = sphi 0, %s74
      %s75 = sphi 0, %s72
      %s76 = sphi 0, %s75
      %s92 = sphi 0, %s76
    $region4: #{tpu_custom_call.1} parent=1 // loop_header_branch
      %23 = sbr.rel (%p21) target = $region8
    $region5: #{tpu_custom_call.1} parent=1 // loop_body
      %s25 = ssub.s32 %s20, 1
      %s26 = ssub.s32 %s20, 2
      %s33 = sadd.s32 1, %s28
      %p34 = scmp.ge.s32.totalorder %s33, 1
      %s35 = scalar_select %p34, 0, %s33
      %s36 = sadd.s32 1, %s27
      %s37 = scalar_select %p34, %s36, %s27
      %p38 = scmp.ge.s32.totalorder %s37, 2
      %s39 = scalar_select %p38, 0, %s37
      %s40 = ssub.s32 %s27, %s39
      %s41 = ssub.s32 %s28, %s35
      %s42 = sor.u32 %s40, %s41
      %p43 = scmp.eq.s32.totalorder %s42, 0
      %s45 = sadd.s32 %s44, 1
      %s46 = scalar_select %p43, %s44, %s45
      %p49 = pneg %p43
      %p50 = scmp.eq.s32.totalorder %s20, 1
      %p51 = por %p49, %p50
      %p52 = scmp.ne.s32.totalorder %s44, %s47
      %p53 = scmp.eq.s32.totalorder %s20, 0
      %p54 = por %p52, %p53
      %p55 = scmp.ne.s32.totalorder %s44, %s47
      %p56 = scmp.eq.s32.totalorder %s25, 1
      %p57 = por %p55, %p56
      %p58 = scmp.ne.s32.totalorder %s47, %s48
      %p59 = scmp.eq.s32.totalorder %s25, 0
      %p60 = por %p58, %p59
      %p61 = scmp.ne.s32.totalorder %s47, %s48
      %p62 = scmp.eq.s32.totalorder %s26, 1
      %p63 = por %p61, %p62
      %p65 = scmp.ne.s32.totalorder %s48, %s64
      %p66 = scmp.eq.s32.totalorder %s26, 0
      %p67 = por %p65, %p66
      %s68 = ssub.s32 %s27, %s39
      %s69 = ssub.s32 %s28, %s35
      %s70 = sor.u32 %s68, %s69
      %p71 = scmp.eq.s32.totalorder %s70, 0
      %s73 = sadd.s32 %s72, 1
      %s74 = scalar_select %p71, %s72, %s73
      %p77 = pneg %p71
      %p78 = scmp.eq.s32.totalorder %s20, 1
      %p79 = por %p77, %p78
      %p80 = scmp.ne.s32.totalorder %s72, %s75
      %p81 = scmp.eq.s32.totalorder %s20, 0
      %p82 = por %p80, %p81
      %p83 = scmp.ne.s32.totalorder %s72, %s75
      %p84 = scmp.eq.s32.totalorder %s25, 1
      %p85 = por %p83, %p84
      %p86 = scmp.ne.s32.totalorder %s75, %s76
      %p87 = scmp.eq.s32.totalorder %s25, 0
      %p88 = por %p86, %p87
      %p89 = scmp.ne.s32.totalorder %s75, %s76
      %p90 = scmp.eq.s32.totalorder %s26, 1
      %p91 = por %p89, %p90
      %p93 = scmp.ne.s32.totalorder %s76, %s92
      %p94 = scmp.eq.s32.totalorder %s26, 0
      %p95 = por %p93, %p94
      %p96 = scmp.le.s32.totalorder 1, %s20
      %p97 = scmp.lt.s32.totalorder %s20, 3
      %p98 = pnand %p96, %p97
      %p99 = pneg %p98
      // Predicated region
      $region9: #{tpu_custom_call.1} parent=5 // pred_check
        _
      $region10: #{tpu_custom_call.1} parent=5 // pred_check_branch
        %101 = sbr.rel (%p98) target = $region12
      $region11: #{tpu_custom_call.1} parent=5 // pred_region
        %s102 = ssub.s32 %s20, 1
      $region12: #{tpu_custom_call.1} parent=5 // pred_fallthru
        _
      %p103 = scmp.lt.s32.totalorder %s20, 2
      // Predicated region
      $region13: #{tpu_custom_call.1} parent=5 // pred_check
        %p104 = pneg %p103
      $region14: #{tpu_custom_call.1} parent=5 // pred_check_branch
        %106 = sbr.rel (%p104) target = $region16
      $region15: #{tpu_custom_call.1} parent=5 // pred_region
        // Predicated region
        $region17: #{tpu_custom_call.1} parent=15 // pred_check
          %p107 = pneg %p54
        $region18: #{tpu_custom_call.1} parent=15 // pred_check_branch
          %109 = sbr.rel (%p107) target = $region20
        $region19: #{tpu_custom_call.1} parent=15 // pred_region
          %s110 = sand.u32 %s44, 1
          %s111 = scalar_lea.sflag [#allocation5], %s110
          %s112 = sand.u32 %s44, 1
          %s113 = smul.addr %s112, 6
          %s114 = scalar_lea.vmem [#allocation4], %s113
          %s116 = ssub.s32 96, 96
          %117 = vsyncadd %s111, %s116
          %s118 = smul.addr %s27, 3
          %s119 = sadd.s32 %s28, %s118
          %s120 = smul.addr %s119, 32
          %s121 = scalar_lea.hbm %s1, %s120
          %s122 = sshll.u32 %s114, 4
          %s123 = int_to_ptr.vmem [resolvable:$true] %s122
          %128 = dma.hbm_to_vmem [thread:$0]  %s121, 96, %s123, %s111, 32, 32, 2
        $region20: #{tpu_custom_call.1} parent=15 // pred_fallthru
          _
      $region16: #{tpu_custom_call.1} parent=5 // pred_fallthru
        _
      %p129 = scmp.le.s32.totalorder 1, %s20
      %p130 = scmp.lt.s32.totalorder %s20, 3
      %p131 = pnand %p129, %p130
      %p132 = pneg %p131
      // Predicated region
      $region21: #{tpu_custom_call.1} parent=5 // pred_check
        _
      $region22: #{tpu_custom_call.1} parent=5 // pred_check_branch
        %134 = sbr.rel (%p131) target = $region24
      $region23: #{tpu_custom_call.1} parent=5 // pred_region
        %s135 = ssub.s32 %s20, 1
        %s136 = sand.u32 %s47, 1
        %s137 = scalar_lea.sflag [#allocation5], %s136
        %s138 = sand.u32 %s47, 1
        %s139 = smul.addr %s138, 6
        %s140 = scalar_lea.vmem [#allocation4], %s139
        // Predicated region
        $region25: #{tpu_custom_call.1} parent=23 // pred_check
          %p141 = pneg %p60
        $region26: #{tpu_custom_call.1} parent=23 // pred_check_branch
          %143 = sbr.rel (%p141) target = $region28
        $region27: #{tpu_custom_call.1} parent=23 // pred_region
          %144 = dma.done %s137, 96
        $region28: #{tpu_custom_call.1} parent=23 // pred_fallthru
          _
        %s145 = sand.u32 %s47, 1
        %s146 = scalar_lea.sflag [#allocation5], %s145
        %s147 = sand.u32 %s47, 1
        %s148 = smul.addr %s147, 6
        %s149 = scalar_lea.vmem [#allocation4], %s148
        %p150 = pneg %p60
        %p151 = pneg %p57
        %p152 = pneg %p88
        %p153 = pneg %p85
        %s154 = sand.u32 %s75, 1
        %s155 = scalar_lea.sflag [#allocation6], %s154
        %s156 = sand.u32 %s75, 1
        %s157 = smul.addr %s156, 6
        %s158 = scalar_lea.vmem [#allocation7], %s157
        %v159 = vld [vmem:[%s140] sm:$0x3]
        %s160 = scalar_lea.vmem %s140, 2 [#allocation4]
        %v161 = vld [vmem:[%s160] sm:$0x3]
        %s162 = scalar_lea.vmem %s140, 4 [#allocation4]
        %v163 = vld [vmem:[%s162] sm:$0x3]
        %s164 = smul.u32 %s29, 128
        %s165 = sld [smem:[#allocation3 + %s164]]
        %v166 = vstv %s165
        %v167 = vmul.f32 %v166, %v159
        %s168 = sadd.s32 %s164, 1
        %s169 = sld [smem:[#allocation3 + %s168]]
        %v170 = vstv %s169
        %v171 = vmul.f32 %v170, %v161
        %v172 = vadd.f32 %v167, %v171
        %s173 = sadd.s32 %s164, 2
        %s174 = sld [smem:[#allocation3 + %s173]]
        %v175 = vstv %s174
        %v176 = vmul.f32 %v175, %v163
        %v177 = vadd.f32 %v172, %v176
        %s178 = sadd.s32 %s164, 3
        %s179 = sld [smem:[#allocation3 + %s178]]
        %v180 = vstv %s179
        %v181 = vadd.f32 %v177, %v180
        %182 = vst [vmem:[%s158] sm:$0x3] %v181
        %s183 = sadd.s32 %s164, 4
        %s184 = sld [smem:[#allocation3 + %s183]]
        %v185 = vstv %s184
        %v186 = vmul.f32 %v185, %v159
        %s187 = sadd.s32 %s164, 5
        %s188 = sld [smem:[#allocation3 + %s187]]
        %v189 = vstv %s188
        %v190 = vmul.f32 %v189, %v161
        %v191 = vadd.f32 %v186, %v190
        %s192 = sadd.s32 %s164, 6
        %s193 = sld [smem:[#allocation3 + %s192]]
        %v194 = vstv %s193
        %v195 = vmul.f32 %v194, %v163
        %v196 = vadd.f32 %v191, %v195
        %s197 = sadd.s32 %s164, 7
        %s198 = sld [smem:[#allocation3 + %s197]]
        %v199 = vstv %s198
        %v200 = vadd.f32 %v196, %v199
        %s201 = scalar_lea.vmem %s158, 2 [#allocation7]
        %202 = vst [vmem:[%s201] sm:$0x3] %v200
        %s203 = sadd.s32 %s164, 8
        %s204 = sld [smem:[#allocation3 + %s203]]
        %v205 = vstv %s204
        %v206 = vmul.f32 %v205, %v159
        %s207 = sadd.s32 %s164, 9
        %s208 = sld [smem:[#allocation3 + %s207]]
        %v209 = vstv %s208
        %v210 = vmul.f32 %v209, %v161
        %v211 = vadd.f32 %v206, %v210
        %s212 = sadd.s32 %s164, 10
        %s213 = sld [smem:[#allocation3 + %s212]]
        %v214 = vstv %s213
        %v215 = vmul.f32 %v214, %v163
        %v216 = vadd.f32 %v211, %v215
        %s217 = sadd.s32 %s164, 11
        %s218 = sld [smem:[#allocation3 + %s217]]
        %v219 = vstv %s218
        %v220 = vadd.f32 %v216, %v219
        %s221 = scalar_lea.vmem %s158, 4 [#allocation7]
        %222 = vst [vmem:[%s221] sm:$0x3] %v220
        %s223 = sand.u32 %s75, 1
        %s224 = scalar_lea.sflag [#allocation6], %s223
        %s225 = sand.u32 %s75, 1
        %s226 = smul.addr %s225, 6
        %s227 = scalar_lea.vmem [#allocation7], %s226
        // Predicated region
        $region29: #{tpu_custom_call.1} parent=23 // pred_check
          %p228 = pneg %p85
        $region30: #{tpu_custom_call.1} parent=23 // pred_check_branch
          %230 = sbr.rel (%p228) target = $region32
        $region31: #{tpu_custom_call.1} parent=23 // pred_region
          %s232 = ssub.s32 96, 96
          %233 = vsyncadd %s224, %s232
          %s234 = smul.addr %s29, 3
          %s235 = sadd.s32 %s30, %s234
          %s236 = smul.addr %s235, 32
          %s237 = scalar_lea.hbm %s2, %s236
          %s238 = sshll.u32 %s227, 4
          %s239 = int_to_ptr.vmem [resolvable:$true] %s238
          %244 = dma.vmem_to_hbm [thread:$0]  %s239, 96, %s237, %s224, 32, 32, 2
        $region32: #{tpu_custom_call.1} parent=23 // pred_fallthru
          _
      $region24: #{tpu_custom_call.1} parent=5 // pred_fallthru
        _
      %p245 = scmp.le.s32.totalorder 2, %s20
      // Predicated region
      $region33: #{tpu_custom_call.1} parent=5 // pred_check
        %p246 = pneg %p245
      $region34: #{tpu_custom_call.1} parent=5 // pred_check_branch
        %248 = sbr.rel (%p246) target = $region36
      $region35: #{tpu_custom_call.1} parent=5 // pred_region
        %s249 = ssub.s32 %s20, 2
        // Predicated region
        $region37: #{tpu_custom_call.1} parent=35 // pred_check
          %p250 = pneg %p91
        $region38: #{tpu_custom_call.1} parent=35 // pred_check_branch
          %252 = sbr.rel (%p250) target = $region40
        $region39: #{tpu_custom_call.1} parent=35 // pred_region
          %s253 = sand.u32 %s76, 1
          %s254 = scalar_lea.sflag [#allocation6], %s253
          %s255 = sand.u32 %s76, 1
          %s256 = smul.addr %s255, 6
          %s257 = scalar_lea.vmem [#allocation7], %s256
          %258 = dma.done %s254, 96
        $region40: #{tpu_custom_call.1} parent=35 // pred_fallthru
          _
      $region36: #{tpu_custom_call.1} parent=5 // pred_fallthru
        _
    $region6: #{tpu_custom_call.1} parent=1 // loop_footer
      %s24 = sadd.s32 1, %s20
    $region7: #{tpu_custom_call.1} parent=1 // loop_footer_branch
      %19 = sbr.rel target = $region3
    $region8: #{tpu_custom_call.1} parent=1 // loop_exit
      _
    %259 = vsyncpa [#allocation5], 1
    %s260 = scalar_lea.sflag [#allocation5], 1
    %261 = vsyncpa %s260, 1
    %262 = vsyncpa [#allocation6], 1
    %s263 = scalar_lea.sflag [#allocation6], 1
    %264 = vsyncpa %s263, 1

</llo_original>
